<compile_context>
chip_gen: v6e
topology: v6e:2x2x1
jax: 0.10.0
libtpu: 0.0.40
codegen_flags: <defaults>
</compile_context>

<pallas_src>
import functools

import jax
import jax.numpy as jnp
from jax.experimental import pallas as pl
from jax.experimental.pallas import tpu as pltpu

_LANE = 128
_PAD_TO = 8 * _LANE   # pad hws to a multiple of one (8, 128) vreg


def _cdiv(a: int, b: int) -> int:
    return -(-a // b)


def _round_up(x: int, m: int) -> int:
    return _cdiv(x, m) * m


def _wbce_kernel(x_ref, t_ref, out_ref, *, rows_total: int, tile_rows: int,
                 blocks_per_chunk: int, grid_rows: int, tail_special: bool,
                 has_overflow: bool):
    """x_ref: (2, TR, 128) logits; t_ref: (TR, 128) int target; out_ref: (3, 8, 128)."""
    chunk = pl.program_id(1)
    i = pl.program_id(2)                 # row-block index inside this chunk (reduction)
    g = chunk * blocks_per_chunk + i     # global row-block index

    @pl.when(i == 0)
    def _():
        out_ref[...] = jnp.zeros_like(out_ref)

    def fold(v):                         # (TR, 128) -> (8, 128); free reshape + vreg adds
        return jnp.sum(v.reshape(tile_rows // 8, 8, _LANE), axis=0)

    def accumulate(d, t0f, t1f):
        # Numerically stable softplus(d) = max(d, 0) + log(1 + exp(-|d|)) on the EUP.
        sp = jnp.maximum(d, 0.0) + jnp.log(1.0 + jnp.exp(-jnp.abs(d)))
        # Picked negative log-probs:  -logp1 = sp,  -logp0 = sp - d.
        out_ref[0] += fold(t0f * (sp - d))   # sum_{t==0} -log_p[:, 0]
        out_ref[1] += fold(t1f * sp)         # sum_{t==1} -log_p[:, 1]
        out_ref[2] += fold(t1f)              # N_plus

    def fast_path():
        # Interior (full, sentinel-free) block: targets are exactly {0, 1}.
        x0 = x_ref[0].astype(jnp.float32)
        x1 = x_ref[1].astype(jnp.float32)
        t1f = t_ref[...].astype(jnp.float32)
        accumulate(x0 - x1, 1.0 - t1f, t1f)

    def careful_path():
        # Tail / clamped-overflow block: rows >= rows_left hold unspecified VMEM
        # contents and (when hws was padded) the lane/row pads carry sentinel 2.
        # d must be sanitized with jnp.where BEFORE abs/exp/log so garbage rows
        # can never produce NaN through 0 * softplus(NaN).
        x0 = x_ref[0].astype(jnp.float32)
        x1 = x_ref[1].astype(jnp.float32)
        rows_left = rows_total - g * tile_rows
        row_ids = jax.lax.broadcasted_iota(jnp.int32, (tile_rows, _LANE), 0)
        valid = row_ids < rows_left
        t = t_ref[...]
        t0f = jnp.logical_and(t == 0, valid).astype(jnp.float32)
        t1f = jnp.logical_and(t == 1, valid).astype(jnp.float32)
        d = jnp.where(valid, x0 - x1, 0.0)
        accumulate(d, t0f, t1f)

    if not (tail_special or has_overflow):
        fast_path()                                  # no per-step branch at all
    elif tail_special and grid_rows == 1:
        careful_path()                               # the only block is the tail
    else:
        threshold = grid_rows - 1 if tail_special else grid_rows
        pl.when(g < threshold)(fast_path)
        pl.when(g >= threshold)(careful_path)


def wbce_loss(logits, target, *, tile_rows: int = 4096):
    """logits: (N, 2, H, W, S) float (f32 or bf16); target: (N, H, W, S) integer in {0, 1}.

    tile_rows=4096 keeps double-buffered inputs (~9 MiB) plus any materialized
    (TR, 128) f32 temporaries well under the 48 MiB VMEM budget (safe on v7x's
    64 MiB VMEM); on v5e/v6e it can be raised to 8192.
    """
    n, c, h, w, s = logits.shape
    assert c == 2, "WBCELoss weight vector has 2 entries => C must be 2"
    hws = h * w * s
    numel = float(n * hws)

    x = logits.reshape(n, c, hws)        # free trailing-dim merge, no dtype cast
    t = target.reshape(n, hws)           # free, keep narrow integer dtype

    has_sentinel = (hws % _PAD_TO) != 0
    if has_sentinel:
        # One pad pass (rare / tiny inputs).  Target sentinel 2 matches neither
        # class and zero logits keep softplus finite, so pads contribute 0.
        pad = _PAD_TO - hws % _PAD_TO
        x = jnp.pad(x, ((0, 0), (0, 0), (0, pad)))
        t = jnp.pad(t, ((0, 0), (0, pad)), constant_values=2)

    r_total = x.shape[-1] // _LANE       # multiple of 8 after padding
    x = x.reshape(n, c, r_total, _LANE)  # free trailing-dim split
    t = t.reshape(n, r_total, _LANE)

    # Row-block size: single exact-fit block when it fits, otherwise an even
    # split rounded to 32 rows (covers int8 / bf16 / f32 sublane granules) so a
    # ragged total never adds an almost-fully-masked extra tile.
    if r_total <= tile_rows:
        tr = r_total
    else:
        tr = _round_up(_cdiv(r_total, _cdiv(r_total, tile_rows)), 32)
    grid_rows = _cdiv(r_total, tr)
    tail_special = has_sentinel or (r_total % tr != 0)

    # Second parallel axis so a 2-TensorCore chip (v7x) is fed even when the
    # batch alone is too narrow / odd.  Harmless on single-TC v5e/v6e.
    n_chunks = 2 if (n % 2 == 1 and grid_rows >= 2) else 1
    bpc = _cdiv(grid_rows, n_chunks)
    has_overflow = n_chunks * bpc > grid_rows
    last_block = grid_rows - 1

    def x_index_map(b, chunk, i):
        g = chunk * bpc + i
        if has_overflow:
            g = jnp.minimum(g, last_block)   # keep the DMA in bounds; kernel masks it
        return (b, 0, g, 0)

    def t_index_map(b, chunk, i):
        g = chunk * bpc + i
        if has_overflow:
            g = jnp.minimum(g, last_block)
        return (b, g, 0)

    kernel = functools.partial(
        _wbce_kernel, rows_total=r_total, tile_rows=tr, blocks_per_chunk=bpc,
        grid_rows=grid_rows, tail_special=tail_special, has_overflow=has_overflow)

    partials = pl.pallas_call(
        kernel,
        out_shape=jax.ShapeDtypeStruct((n, n_chunks, 3, 8, _LANE), jnp.float32),
        grid_spec=pltpu.PrefetchScalarGridSpec(
            num_scalar_prefetch=0,
            grid=(n, n_chunks, bpc),
            in_specs=[
                pl.BlockSpec((pl.Squeezed(), c, tr, _LANE), x_index_map),
                pl.BlockSpec((pl.Squeezed(), tr, _LANE), t_index_map),
            ],
            out_specs=pl.BlockSpec((pl.Squeezed(), pl.Squeezed(), 3, 8, _LANE),
                                   lambda b, chunk, i: (b, chunk, 0, 0, 0)),
        ),
        compiler_params=pltpu.CompilerParams(
            dimension_semantics=("parallel", "parallel", "arbitrary"),
            vmem_limit_bytes=48 * 1024 * 1024,
        ),
    )(x, t)

    # Tiny JAX epilogue: combine per-(batch, chunk) partial sums.
    sums = jnp.sum(partials, axis=(0, 1, 3, 4))    # (3,) = [A, B, N_plus]
    a, b, n_plus = sums[0], sums[1], sums[2]
    r0 = n_plus / numel
    r1 = 1.0 - r0
    # TODO(synk): the host-side `if WBCE > 1e7: print(...)` diagnostic has no
    # in-kernel equivalent; the returned value is identical.
    return (r0 * a + r1 * b) / numel


def wbce_loss_ref(logits, target):
    """Pure-JAX reference mirroring the PyTorch forward."""
    n, c, h, w, s = logits.shape
    numel = n * h * w * s
    logp = jax.nn.log_softmax(logits.astype(jnp.float32), axis=1)
    logp = jnp.transpose(logp, (0, 2, 3, 4, 1)).reshape(-1, c)
    t = target.reshape(-1)
    n_plus = jnp.sum(target.astype(jnp.float32))
    r0 = n_plus / numel
    r1 = 1.0 - r0
    w_per = jnp.where(t == 1, r1, r0)
    picked = jnp.take_along_axis(logp, t[:, None].astype(jnp.int32), axis=1)[:, 0]
    return -jnp.sum(w_per * picked) / numel


if __name__ == "__main__":
    root = jax.random.PRNGKey(0)

    # (tag, n, h, w, s, tile_rows) — small shapes exercising each static path:
    cases = [
        ("single-exact-block", 2, 16, 16, 8, 4096),   # fast path, grid (2,1,1)
        ("single-exact-block2", 2, 16, 16, 16, 4096),  # fast path, 32-row block
        ("chunked-ragged-tail", 1, 16, 16, 24, 32),    # n_chunks=2, fast + careful tail
        ("chunk-overflow", 1, 16, 16, 48, 32),         # n_chunks=2, clamped overflow block
        ("lane-pad-sentinel", 2, 5, 7, 9, 4096),       # padded hws, careful-only path
    ]
    for idx, (tag, n, h, w, s, tile_rows) in enumerate(cases):
        k1, k2 = jax.random.split(jax.random.fold_in(root, idx))
        logits = jax.random.normal(k1, (n, 2, h, w, s), dtype=jnp.float32)
        target = jax.random.bernoulli(k2, 0.3, (n, h, w, s)).astype(jnp.int8)

        loss = jax.block_until_ready(wbce_loss(logits, target, tile_rows=tile_rows))
        ref = jax.block_until_ready(wbce_loss_ref(logits, target))
        err = abs(float(loss) - float(ref))
        assert err < 1e-4 * max(1.0, abs(float(ref))), (tag, float(loss), float(ref))

    print("KERNEL_OK")
</pallas_src>

<mosaic_0001>
module attributes {stable_mosaic.version = 11 : i64} {
  func.func @_wbce_kernel(%arg0: i32, %arg1: i32, %arg2: i32, %arg3: memref<1x2x16x128xf32, #tpu.memory_space<vmem>>, %arg4: memref<1x16x128xi8, #tpu.memory_space<vmem>>, %arg5: memref<1x1x3x8x128xf32, #tpu.memory_space<vmem>>) attributes {dimension_semantics = [#tpu.dimension_semantics<parallel>, #tpu.dimension_semantics<parallel>, #tpu.dimension_semantics<arbitrary>], iteration_bounds = array<i64: 2, 1, 1>, scalar_prefetch = 0 : i64, scratch_operands = 0 : i64, tpu.core_type = #tpu.core_type<tc>, window_params = [{transform_indices = @transform_0, window_bounds = array<i64: 1, 2, 16, 128>}, {transform_indices = @transform_1, window_bounds = array<i64: 1, 16, 128>}, {transform_indices = @transform_2, window_bounds = array<i64: 1, 1, 3, 8, 128>}]} {
    %c0_i32 = arith.constant 0 : i32
    %0 = arith.cmpi eq, %arg2, %c0_i32 : i32
    %1 = arith.extui %0 : i1 to i32
    %c0_i32_0 = arith.constant 0 : i32
    %2 = arith.cmpi ne, %1, %c0_i32_0 : i32
    scf.if %2 {
      %cst_45 = arith.constant 0.000000e+00 : f32
      %50 = vector.broadcast %cst_45 : f32 to vector<3x8x128xf32>
      %c0_46 = arith.constant 0 : index
      %c0_47 = arith.constant 0 : index
      %c0_48 = arith.constant 0 : index
      %c0_49 = arith.constant 0 : index
      %c0_50 = arith.constant 0 : index
      %51 = vector.load %arg5[%c0_46, %c0_47, %c0_48, %c0_49, %c0_50] : memref<1x1x3x8x128xf32, #tpu.memory_space<vmem>>, vector<1x1x3x8x128xf32>
      %52 = vector.shape_cast %51 : vector<1x1x3x8x128xf32> to vector<3x8x128xf32>
      %53 = vector.shape_cast %50 : vector<3x8x128xf32> to vector<1x1x3x8x128xf32>
      tpu.vector_store %arg5[%c0_46, %c0_47, %c0_48, %c0_49, %c0_50], %53 {strides = array<i32>} : memref<1x1x3x8x128xf32, #tpu.memory_space<vmem>>, vector<1x1x3x8x128xf32>,
    } else {
    }
    %c0 = arith.constant 0 : index
    %c0_1 = arith.constant 0 : index
    %c0_2 = arith.constant 0 : index
    %c0_3 = arith.constant 0 : index
    %3 = vector.load %arg3[%c0, %c0_1, %c0_2, %c0_3] : memref<1x2x16x128xf32, #tpu.memory_space<vmem>>, vector<1x1x16x128xf32>
    %4 = vector.shape_cast %3 : vector<1x1x16x128xf32> to vector<16x128xf32>
    %c0_4 = arith.constant 0 : index
    %c1 = arith.constant 1 : index
    %c0_5 = arith.constant 0 : index
    %c0_6 = arith.constant 0 : index
    %5 = vector.load %arg3[%c0_4, %c1, %c0_5, %c0_6] : memref<1x2x16x128xf32, #tpu.memory_space<vmem>>, vector<1x1x16x128xf32>
    %6 = vector.shape_cast %5 : vector<1x1x16x128xf32> to vector<16x128xf32>
    %c0_7 = arith.constant 0 : index
    %c0_8 = arith.constant 0 : index
    %c0_9 = arith.constant 0 : index
    %7 = vector.load %arg4[%c0_7, %c0_8, %c0_9] : memref<1x16x128xi8, #tpu.memory_space<vmem>>, vector<1x16x128xi8>
    %8 = vector.shape_cast %7 : vector<1x16x128xi8> to vector<16x128xi8>
    %9 = arith.sitofp %8 : vector<16x128xi8> to vector<16x128xf32>
    %10 = arith.subf %4, %6 : vector<16x128xf32>
    %cst = arith.constant 1.000000e+00 : f32
    %11 = vector.broadcast %cst : f32 to vector<16x128xf32>
    %12 = arith.subf %11, %9 : vector<16x128xf32>
    %cst_10 = arith.constant 0.000000e+00 : f32
    %13 = vector.broadcast %cst_10 : f32 to vector<16x128xf32>
    %14 = arith.maximumf %10, %13 : vector<16x128xf32>
    %15 = math.absf %10 : vector<16x128xf32>
    %cst_11 = arith.constant 0.000000e+00 : f32
    %16 = vector.broadcast %cst_11 : f32 to vector<16x128xf32>
    %17 = arith.subf %16, %15 : vector<16x128xf32>
    %18 = math.exp %17 : vector<16x128xf32>
    %cst_12 = arith.constant 1.000000e+00 : f32
    %19 = vector.broadcast %cst_12 : f32 to vector<16x128xf32>
    %20 = arith.addf %19, %18 : vector<16x128xf32>
    %21 = math.log %20 : vector<16x128xf32>
    %22 = arith.addf %14, %21 : vector<16x128xf32>
    %c0_13 = arith.constant 0 : index
    %c0_14 = arith.constant 0 : index
    %c0_15 = arith.constant 0 : index
    %c0_16 = arith.constant 0 : index
    %c0_17 = arith.constant 0 : index
    %23 = vector.load %arg5[%c0_13, %c0_14, %c0_15, %c0_16, %c0_17] : memref<1x1x3x8x128xf32, #tpu.memory_space<vmem>>, vector<1x1x1x8x128xf32>
    %24 = vector.shape_cast %23 : vector<1x1x1x8x128xf32> to vector<8x128xf32>
    %25 = arith.subf %22, %10 : vector<16x128xf32>
    %26 = arith.mulf %12, %25 : vector<16x128xf32>
    %27 = vector.shape_cast %26 : vector<16x128xf32> to vector<2x8x128xf32>
    %cst_18 = arith.constant dense<0.000000e+00> : vector<8x128xf32>
    %28 = vector.multi_reduction <add>, %27, %cst_18 [0] : vector<2x8x128xf32> to vector<8x128xf32>
    %29 = arith.addf %24, %28 : vector<8x128xf32>
    %c0_19 = arith.constant 0 : index
    %c0_20 = arith.constant 0 : index
    %c0_21 = arith.constant 0 : index
    %c0_22 = arith.constant 0 : index
    %c0_23 = arith.constant 0 : index
    %30 = vector.load %arg5[%c0_19, %c0_20, %c0_21, %c0_22, %c0_23] : memref<1x1x3x8x128xf32, #tpu.memory_space<vmem>>, vector<1x1x1x8x128xf32>
    %31 = vector.shape_cast %30 : vector<1x1x1x8x128xf32> to vector<8x128xf32>
    %32 = vector.shape_cast %29 : vector<8x128xf32> to vector<1x1x1x8x128xf32>
    tpu.vector_store %arg5[%c0_19, %c0_20, %c0_21, %c0_22, %c0_23], %32 {strides = array<i32>} : memref<1x1x3x8x128xf32, #tpu.memory_space<vmem>>, vector<1x1x1x8x128xf32>,
    %c0_24 = arith.constant 0 : index
    %c0_25 = arith.constant 0 : index
    %c1_26 = arith.constant 1 : index
    %c0_27 = arith.constant 0 : index
    %c0_28 = arith.constant 0 : index
    %33 = vector.load %arg5[%c0_24, %c0_25, %c1_26, %c0_27, %c0_28] : memref<1x1x3x8x128xf32, #tpu.memory_space<vmem>>, vector<1x1x1x8x128xf32>
    %34 = vector.shape_cast %33 : vector<1x1x1x8x128xf32> to vector<8x128xf32>
    %35 = arith.mulf %9, %22 : vector<16x128xf32>
    %36 = vector.shape_cast %35 : vector<16x128xf32> to vector<2x8x128xf32>
    %cst_29 = arith.constant dense<0.000000e+00> : vector<8x128xf32>
    %37 = vector.multi_reduction <add>, %36, %cst_29 [0] : vector<2x8x128xf32> to vector<8x128xf32>
    %38 = arith.addf %34, %37 : vector<8x128xf32>
    %c0_30 = arith.constant 0 : index
    %c0_31 = arith.constant 0 : index
    %c1_32 = arith.constant 1 : index
    %c0_33 = arith.constant 0 : index
    %c0_34 = arith.constant 0 : index
    %39 = vector.load %arg5[%c0_30, %c0_31, %c1_32, %c0_33, %c0_34] : memref<1x1x3x8x128xf32, #tpu.memory_space<vmem>>, vector<1x1x1x8x128xf32>
    %40 = vector.shape_cast %39 : vector<1x1x1x8x128xf32> to vector<8x128xf32>
    %41 = vector.shape_cast %38 : vector<8x128xf32> to vector<1x1x1x8x128xf32>
    tpu.vector_store %arg5[%c0_30, %c0_31, %c1_32, %c0_33, %c0_34], %41 {strides = array<i32>} : memref<1x1x3x8x128xf32, #tpu.memory_space<vmem>>, vector<1x1x1x8x128xf32>,
    %c0_35 = arith.constant 0 : index
    %c0_36 = arith.constant 0 : index
    %c2 = arith.constant 2 : index
    %c0_37 = arith.constant 0 : index
    %c0_38 = arith.constant 0 : index
    %42 = vector.load %arg5[%c0_35, %c0_36, %c2, %c0_37, %c0_38] : memref<1x1x3x8x128xf32, #tpu.memory_space<vmem>>, vector<1x1x1x8x128xf32>
    %43 = vector.shape_cast %42 : vector<1x1x1x8x128xf32> to vector<8x128xf32>
    %44 = vector.shape_cast %9 : vector<16x128xf32> to vector<2x8x128xf32>
    %cst_39 = arith.constant dense<0.000000e+00> : vector<8x128xf32>
    %45 = vector.multi_reduction <add>, %44, %cst_39 [0] : vector<2x8x128xf32> to vector<8x128xf32>
    %46 = arith.addf %43, %45 : vector<8x128xf32>
    %c0_40 = arith.constant 0 : index
    %c0_41 = arith.constant 0 : index
    %c2_42 = arith.constant 2 : index
    %c0_43 = arith.constant 0 : index
    %c0_44 = arith.constant 0 : index
    %47 = vector.load %arg5[%c0_40, %c0_41, %c2_42, %c0_43, %c0_44] : memref<1x1x3x8x128xf32, #tpu.memory_space<vmem>>, vector<1x1x1x8x128xf32>
    %48 = vector.shape_cast %47 : vector<1x1x1x8x128xf32> to vector<8x128xf32>
    %49 = vector.shape_cast %46 : vector<8x128xf32> to vector<1x1x1x8x128xf32>
    tpu.vector_store %arg5[%c0_40, %c0_41, %c2_42, %c0_43, %c0_44], %49 {strides = array<i32>} : memref<1x1x3x8x128xf32, #tpu.memory_space<vmem>>, vector<1x1x1x8x128xf32>,
    return
  }
  func.func @transform_0(%arg0: i32, %arg1: i32, %arg2: i32) -> (i32, i32, i32, i32) {
    %c1_i32 = arith.constant 1 : i32
    %0 = arith.muli %arg1, %c1_i32 : i32
    %1 = arith.addi %0, %arg2 : i32
    %c0_i32 = arith.constant 0 : i32
    %c0_i32_0 = arith.constant 0 : i32
    %c0_i32_1 = arith.constant 0 : i32
    return %arg0, %c0_i32, %1, %c0_i32_0 : i32, i32, i32, i32
  }
  func.func @transform_1(%arg0: i32, %arg1: i32, %arg2: i32) -> (i32, i32, i32) {
    %c1_i32 = arith.constant 1 : i32
    %0 = arith.muli %arg1, %c1_i32 : i32
    %1 = arith.addi %0, %arg2 : i32
    %c0_i32 = arith.constant 0 : i32
    %c0_i32_0 = arith.constant 0 : i32
    return %arg0, %1, %c0_i32 : i32, i32, i32
  }
  func.func @transform_2(%arg0: i32, %arg1: i32, %arg2: i32) -> (i32, i32, i32, i32, i32) {
    %c0_i32 = arith.constant 0 : i32
    %c0_i32_0 = arith.constant 0 : i32
    %c0_i32_1 = arith.constant 0 : i32
    %c0_i32_2 = arith.constant 0 : i32
    return %arg0, %arg1, %c0_i32, %c0_i32_0, %c0_i32_1 : i32, i32, i32, i32, i32
  }
}

</mosaic_0001>

<llo_original>
// kernel: tpu_custom_call.1
$region0: #{tpu_custom_call.1}
  #allocation0 [shape = 'u32[]', space=smem, size = 0x4, offset = 0x4, fixed_abs, tag = 'smem constant byte address 0x4 - core index']
  #allocation1 [shape = 'u32[144,128]{1,0:T(1,128)}', space=vmem, size = 0x12000, scoped, tag = 'internal scratch']
  %s0 = inlined_call_operand.hbm [shape: f32[2,2,16,128], index: 0, kind: input, shape index: {}]
  %s1 = inlined_call_operand.hbm [shape: s8[2,16,128], index: 1, kind: input, shape index: {}]
  %s2 = inlined_call_operand.hbm [shape: f32[2,1,3,8,128], index: 2, kind: output, shape index: {}]
  %s3 = sld [smem:[#allocation0]]
  $region53: #{tpu_custom_call.1} parent=0
    _
  %s5 = ssub.s32 1, %s3
  %s6 = scalar_select 0, %s5, %s3
  $region1: #{tpu_custom_call.1} parent=0
    #allocation2 [shape = 'u8[32768]{0}', space=vmem, size = 0x8000, scoped, tag = 'input window, operand 0']
    #allocation3 [shape = 's32[2]{0}', space=sflag, size = 0x8, scoped, tag = 'scoped memory for tpu_custom_call.1']
    #allocation4 [shape = 's32[2]{0}', space=sflag, size = 0x8, scoped, tag = 'scoped memory for tpu_custom_call.1']
    #allocation5 [shape = 'u8[4096]{0}', space=vmem, size = 0x1000, scoped, tag = 'input window, operand 1']
    #allocation6 [shape = 's32[2]{0}', space=sflag, size = 0x8, scoped, tag = 'scoped memory for tpu_custom_call.1']
    #allocation7 [shape = 'u8[24576]{0}', space=vmem, size = 0x6000, scoped, tag = 'output window, operand 0']
    %7 = vsyncpa [#allocation3], 0
    %s8 = scalar_lea.sflag [#allocation3], 1
    %9 = vsyncpa %s8, 0
    %10 = vsyncpa [#allocation6], 0
    %s11 = scalar_lea.sflag [#allocation6], 1
    %12 = vsyncpa %s11, 0
    %13 = vsyncpa [#allocation4], 0
    %s14 = scalar_lea.sflag [#allocation4], 1
    %15 = vsyncpa %s14, 0
    loop: start=0, step=1, limit=4
    $region2: #{tpu_custom_call.1} parent=1 // loop_pre_header
      _
    $region3: #{tpu_custom_call.1} parent=1 // loop_header
      %s17 = sphi 0, %s21
      %p18 = scmp.ge.s32.totalorder %s17, 4
      %s24 = sphi 0, %s43
      %s25 = sphi 0, %s39
      %s26 = sphi 0, %s35
      %s27 = sphi 0, %s24
      %s28 = sphi 0, %s25
      %s29 = sphi 0, %s26
      %s30 = sphi 0, %s27
      %s31 = sphi 0, %s28
      %s32 = sphi 0, %s29
      %s50 = sphi 0, %s52
      %s53 = sphi 0, %s50
      %s54 = sphi 0, %s53
      %s70 = sphi 0, %s54
      %s80 = sphi 0, %s82
      %s83 = sphi 0, %s80
      %s84 = sphi 0, %s83
      %s100 = sphi 0, %s84
      %s108 = sphi 0, %s110
      %s111 = sphi 0, %s108
      %s112 = sphi 0, %s111
      %s128 = sphi 0, %s112
    $region4: #{tpu_custom_call.1} parent=1 // loop_header_branch
      %20 = sbr.rel (%p18) target = $region8
    $region5: #{tpu_custom_call.1} parent=1 // loop_body
      %s22 = ssub.s32 %s17, 1
      %s23 = ssub.s32 %s17, 2
      %s33 = sadd.s32 1, %s26
      %p34 = scmp.ge.s32.totalorder %s33, 1
      %s35 = scalar_select %p34, 0, %s33
      %s36 = sadd.s32 1, %s25
      %s37 = scalar_select %p34, %s36, %s25
      %p38 = scmp.ge.s32.totalorder %s37, 1
      %s39 = scalar_select %p38, 0, %s37
      %s40 = sadd.s32 1, %s24
      %s41 = scalar_select %p38, %s40, %s24
      %p42 = scmp.ge.s32.totalorder %s41, 2
      %s43 = scalar_select %p42, 0, %s41
      %s44 = sadd.s32 %s25, %s26
      %s45 = sadd.s32 %s39, %s35
      %s46 = ssub.s32 %s24, %s43
      %s47 = ssub.s32 %s44, %s45
      %s48 = sor.u32 %s46, %s47
      %p49 = scmp.eq.s32.totalorder %s48, 0
      %s51 = sadd.s32 %s50, 1
      %s52 = scalar_select %p49, %s50, %s51
      %p55 = pneg %p49
      %p56 = scmp.eq.s32.totalorder %s17, 1
      %p57 = por %p55, %p56
      %p58 = scmp.ne.s32.totalorder %s50, %s53
      %p59 = scmp.eq.s32.totalorder %s17, 0
      %p60 = por %p58, %p59
      %p61 = scmp.ne.s32.totalorder %s50, %s53
      %p62 = scmp.eq.s32.totalorder %s22, 1
      %p63 = por %p61, %p62
      %p64 = scmp.ne.s32.totalorder %s53, %s54
      %p65 = scmp.eq.s32.totalorder %s22, 0
      %p66 = por %p64, %p65
      %p67 = scmp.ne.s32.totalorder %s53, %s54
      %p68 = scmp.eq.s32.totalorder %s23, 1
      %p69 = por %p67, %p68
      %p71 = scmp.ne.s32.totalorder %s54, %s70
      %p72 = scmp.eq.s32.totalorder %s23, 0
      %p73 = por %p71, %p72
      %s74 = sadd.s32 %s25, %s26
      %s75 = sadd.s32 %s39, %s35
      %s76 = ssub.s32 %s24, %s43
      %s77 = ssub.s32 %s74, %s75
      %s78 = sor.u32 %s76, %s77
      %p79 = scmp.eq.s32.totalorder %s78, 0
      %s81 = sadd.s32 %s80, 1
      %s82 = scalar_select %p79, %s80, %s81
      %p85 = pneg %p79
      %p86 = scmp.eq.s32.totalorder %s17, 1
      %p87 = por %p85, %p86
      %p88 = scmp.ne.s32.totalorder %s80, %s83
      %p89 = scmp.eq.s32.totalorder %s17, 0
      %p90 = por %p88, %p89
      %p91 = scmp.ne.s32.totalorder %s80, %s83
      %p92 = scmp.eq.s32.totalorder %s22, 1
      %p93 = por %p91, %p92
      %p94 = scmp.ne.s32.totalorder %s83, %s84
      %p95 = scmp.eq.s32.totalorder %s22, 0
      %p96 = por %p94, %p95
      %p97 = scmp.ne.s32.totalorder %s83, %s84
      %p98 = scmp.eq.s32.totalorder %s23, 1
      %p99 = por %p97, %p98
      %p101 = scmp.ne.s32.totalorder %s84, %s100
      %p102 = scmp.eq.s32.totalorder %s23, 0
      %p103 = por %p101, %p102
      %s104 = ssub.s32 %s24, %s43
      %s105 = ssub.s32 %s25, %s39
      %s106 = sor.u32 %s104, %s105
      %p107 = scmp.eq.s32.totalorder %s106, 0
      %s109 = sadd.s32 %s108, 1
      %s110 = scalar_select %p107, %s108, %s109
      %p113 = pneg %p107
      %p114 = scmp.eq.s32.totalorder %s17, 1
      %p115 = por %p113, %p114
      %p116 = scmp.ne.s32.totalorder %s108, %s111
      %p117 = scmp.eq.s32.totalorder %s17, 0
      %p118 = por %p116, %p117
      %p119 = scmp.ne.s32.totalorder %s108, %s111
      %p120 = scmp.eq.s32.totalorder %s22, 1
      %p121 = por %p119, %p120
      %p122 = scmp.ne.s32.totalorder %s111, %s112
      %p123 = scmp.eq.s32.totalorder %s22, 0
      %p124 = por %p122, %p123
      %p125 = scmp.ne.s32.totalorder %s111, %s112
      %p126 = scmp.eq.s32.totalorder %s23, 1
      %p127 = por %p125, %p126
      %p129 = scmp.ne.s32.totalorder %s112, %s128
      %p130 = scmp.eq.s32.totalorder %s23, 0
      %p131 = por %p129, %p130
      %p132 = scmp.le.s32.totalorder 1, %s17
      %p133 = scmp.lt.s32.totalorder %s17, 3
      %p134 = pnand %p132, %p133
      %p135 = pneg %p134
      // Predicated region
      $region9: #{tpu_custom_call.1} parent=5 // pred_check
        _
      $region10: #{tpu_custom_call.1} parent=5 // pred_check_branch
        %137 = sbr.rel (%p134) target = $region12
      $region11: #{tpu_custom_call.1} parent=5 // pred_region
        %s138 = ssub.s32 %s17, 1
      $region12: #{tpu_custom_call.1} parent=5 // pred_fallthru
        _
      %p139 = scmp.lt.s32.totalorder %s17, 2
      // Predicated region
      $region13: #{tpu_custom_call.1} parent=5 // pred_check
        %p140 = pneg %p139
      $region14: #{tpu_custom_call.1} parent=5 // pred_check_branch
        %142 = sbr.rel (%p140) target = $region16
      $region15: #{tpu_custom_call.1} parent=5 // pred_region
        // Predicated region
        $region17: #{tpu_custom_call.1} parent=15 // pred_check
          %p143 = pneg %p60
        $region18: #{tpu_custom_call.1} parent=15 // pred_check_branch
          %145 = sbr.rel (%p143) target = $region20
        $region19: #{tpu_custom_call.1} parent=15 // pred_region
          %s146 = sand.u32 %s50, 1
          %s147 = scalar_lea.sflag [#allocation3], %s146
          %s148 = sand.u32 %s50, 1
          %s149 = smul.addr %s148, 32
          %s150 = scalar_lea.vmem [#allocation2], %s149
          %s151 = sadd.s32 %s25, %s26
          %s152 = smul.u32 2, %s151
          %s154 = ssub.s32 512, 512
          %155 = vsyncadd %s147, %s154
          %s156 = smul.addr %s24, 4
          %s157 = sadd.s32 %s152, %s156
          %s158 = smul.addr %s157, 128
          %s159 = scalar_lea.hbm %s0, %s158
          %s160 = sshll.u32 %s150, 4
          %s161 = int_to_ptr.vmem [resolvable:$true] %s160
          %166 = dma.hbm_to_vmem [thread:$0]  %s159, 512, %s161, %s147, 128, 128, 8
        $region20: #{tpu_custom_call.1} parent=15 // pred_fallthru
          _
        // Predicated region
        $region21: #{tpu_custom_call.1} parent=15 // pred_check
          %p167 = pneg %p90
        $region22: #{tpu_custom_call.1} parent=15 // pred_check_branch
          %169 = sbr.rel (%p167) target = $region24
        $region23: #{tpu_custom_call.1} parent=15 // pred_region
          %s170 = sand.u32 %s80, 1
          %s171 = scalar_lea.sflag [#allocation6], %s170
          %s172 = sand.u32 %s80, 1
          %s173 = smul.addr %s172, 4
          %s174 = scalar_lea.vmem [#allocation5], %s173
          %s175 = sadd.s32 %s25, %s26
          %s176 = smul.u32 2, %s175
          %s178 = ssub.s32 64, 64
          %179 = vsyncadd %s171, %s178
          %s180 = smul.addr %s24, 2
          %s181 = sadd.s32 %s176, %s180
          %s182 = smul.addr %s181, 32
          %s183 = scalar_lea.hbm %s1, %s182
          %s184 = sshll.u32 %s174, 4
          %s185 = int_to_ptr.vmem [resolvable:$true] %s184
          %190 = dma.hbm_to_vmem [thread:$0]  %s183, 64, %s185, %s171, 32, 32, 2
        $region24: #{tpu_custom_call.1} parent=15 // pred_fallthru
          _
      $region16: #{tpu_custom_call.1} parent=5 // pred_fallthru
        _
      %p191 = scmp.le.s32.totalorder 1, %s17
      %p192 = scmp.lt.s32.totalorder %s17, 3
      %p193 = pnand %p191, %p192
      %p194 = pneg %p193
      // Predicated region
      $region25: #{tpu_custom_call.1} parent=5 // pred_check
        _
      $region26: #{tpu_custom_call.1} parent=5 // pred_check_branch
        %196 = sbr.rel (%p193) target = $region28
      $region27: #{tpu_custom_call.1} parent=5 // pred_region
        %s197 = ssub.s32 %s17, 1
        %s198 = sand.u32 %s53, 1
        %s199 = scalar_lea.sflag [#allocation3], %s198
        %s200 = sand.u32 %s53, 1
        %s201 = smul.addr %s200, 32
        %s202 = scalar_lea.vmem [#allocation2], %s201
        // Predicated region
        $region29: #{tpu_custom_call.1} parent=27 // pred_check
          %p203 = pneg %p66
        $region30: #{tpu_custom_call.1} parent=27 // pred_check_branch
          %205 = sbr.rel (%p203) target = $region32
        $region31: #{tpu_custom_call.1} parent=27 // pred_region
          %206 = dma.done %s199, 512
        $region32: #{tpu_custom_call.1} parent=27 // pred_fallthru
          _
        %s207 = sand.u32 %s83, 1
        %s208 = scalar_lea.sflag [#allocation6], %s207
        %s209 = sand.u32 %s83, 1
        %s210 = smul.addr %s209, 4
        %s211 = scalar_lea.vmem [#allocation5], %s210
        // Predicated region
        $region33: #{tpu_custom_call.1} parent=27 // pred_check
          %p212 = pneg %p96
        $region34: #{tpu_custom_call.1} parent=27 // pred_check_branch
          %214 = sbr.rel (%p212) target = $region36
        $region35: #{tpu_custom_call.1} parent=27 // pred_region
          %215 = dma.done %s208, 64
        $region36: #{tpu_custom_call.1} parent=27 // pred_fallthru
          _
        %s216 = sand.u32 %s53, 1
        %s217 = scalar_lea.sflag [#allocation3], %s216
        %s218 = sand.u32 %s53, 1
        %s219 = smul.addr %s218, 32
        %s220 = scalar_lea.vmem [#allocation2], %s219
        %p221 = pneg %p66
        %p222 = pneg %p63
        %s223 = sand.u32 %s83, 1
        %s224 = scalar_lea.sflag [#allocation6], %s223
        %s225 = sand.u32 %s83, 1
        %s226 = smul.addr %s225, 4
        %s227 = scalar_lea.vmem [#allocation5], %s226
        %p228 = pneg %p96
        %p229 = pneg %p93
        %p230 = pneg %p124
        %p231 = pneg %p121
        %s232 = sand.u32 %s111, 1
        %s233 = scalar_lea.sflag [#allocation4], %s232
        %s234 = sand.u32 %s111, 1
        %s235 = smul.addr %s234, 24
        %s236 = scalar_lea.vmem [#allocation7], %s235
        %s237 = sadd.s32 %s28, %s29
        %s238 = smul.u32 2, %s237
        %s239 = sadd.s32 %s28, %s29
        %s240 = smul.u32 2, %s239
        %p241 = scmp.eq.s32.totalorder %s29, 0
        // Predicated region
        $region37: #{tpu_custom_call.1} parent=27 // pred_check
          %p242 = pneg %p241
        $region38: #{tpu_custom_call.1} parent=27 // pred_check_branch
          %244 = sbr.rel (%p242) target = $region40
        $region39: #{tpu_custom_call.1} parent=27 // pred_region
          %245 = vst [vmem:[%s236] sm:$0xff] 0.0
          %246 = vst [vmem:[%s236 + $0x8] sm:$0xff] 0.0
          %247 = vst [vmem:[%s236 + $0x10] sm:$0xff] 0.0
        $region40: #{tpu_custom_call.1} parent=27 // pred_fallthru
          _
        %v248 = vld [vmem:[%s202] sm:$0xff]
        %v249 = vld [vmem:[%s202 + $0x8] sm:$0xff]
        %s250 = scalar_lea.vmem %s202, 16 [#allocation2]
        %v251 = vld [vmem:[%s250] sm:$0xff]
        %v252 = vld [vmem:[%s250 + $0x8] sm:$0xff]
        %v253 = vld [vmem:[%s211] sm:$0x3]
        %v254 = vld [vmem:[%s211 + $0x2] sm:$0x3]
        %v255 = vunpack.c.0.s8 %v253
        %v256 = vunpack.c.0.s8 %v254
        %v257 = vcvt.s32.f32 %v255
        %v258 = vcvt.s32.f32 %v256
        %v259 = vsub.f32 %v248, %v251
        %v260 = vsub.f32 %v249, %v252
        %v261 = vsub.f32 1.0, %v257
        %v262 = vsub.f32 1.0, %v258
        %v263 = vmax.f32 %v259, 0.0
        %v264 = vmax.f32 %v260, 0.0
        %v265 = vand.u32 2147483647, %v259
        %v266 = vand.u32 2147483647, %v260
        %v267 = vsub.f32 0.0, %v265
        %v268 = vsub.f32 0.0, %v266
        %v269 = vmul.f32 %v267, 1.442695
        %v270 = vpow.pop %v269
        %v271 = vmul.f32 %v268, 1.442695
        %v272 = vpow.pop %v271
        %v273 = vadd.f32 %v270, 1.0
        %v274 = vadd.f32 %v272, 1.0
        %v275 = vlog2.pop %v273
        %v276 = vmul.f32 %v275, 0.6931472
        %v277 = vlog2.pop %v274
        %v278 = vmul.f32 %v277, 0.6931472
        %v279 = vadd.f32 %v263, %v276
        %v280 = vadd.f32 %v264, %v278
        %v281 = vld [vmem:[%s236] sm:$0xff]
        %v282 = vsub.f32 %v279, %v259
        %v283 = vsub.f32 %v280, %v260
        %v284 = vmul.f32 %v261, %v282
        %v285 = vmul.f32 %v262, %v283
        %v286 = vadd.f32 %v284, %v285
        %v287 = vadd.f32 %v281, %v286
        %288 = vst [vmem:[%s236] sm:$0xff] %v287
        %s289 = scalar_lea.vmem %s236, 8 [#allocation7]
        %v290 = vld [vmem:[%s289] sm:$0xff]
        %v291 = vmul.f32 %v257, %v279
        %v292 = vmul.f32 %v258, %v280
        %v293 = vadd.f32 %v291, %v292
        %v294 = vadd.f32 %v290, %v293
        %295 = vst [vmem:[%s289] sm:$0xff] %v294
        %s296 = scalar_lea.vmem %s236, 16 [#allocation7]
        %v297 = vld [vmem:[%s296] sm:$0xff]
        %v298 = vadd.f32 %v257, %v258
        %v299 = vadd.f32 %v297, %v298
        %300 = vst [vmem:[%s296] sm:$0xff] %v299
        %s301 = sand.u32 %s111, 1
        %s302 = scalar_lea.sflag [#allocation4], %s301
        %s303 = sand.u32 %s111, 1
        %s304 = smul.addr %s303, 24
        %s305 = scalar_lea.vmem [#allocation7], %s304
        // Predicated region
        $region41: #{tpu_custom_call.1} parent=27 // pred_check
          %p306 = pneg %p121
        $region42: #{tpu_custom_call.1} parent=27 // pred_check_branch
          %308 = sbr.rel (%p306) target = $region44
        $region43: #{tpu_custom_call.1} parent=27 // pred_region
          %s310 = ssub.s32 384, 384
          %311 = vsyncadd %s302, %s310
          %s312 = smul.addr %s28, 3
          %s313 = smul.addr %s27, 3
          %s314 = sadd.s32 %s312, %s313
          %s315 = smul.addr %s314, 128
          %s316 = scalar_lea.hbm %s2, %s315
          %s317 = sshll.u32 %s305, 4
          %s318 = int_to_ptr.vmem [resolvable:$true] %s317
          %323 = dma.vmem_to_hbm [thread:$0]  %s318, 384, %s316, %s302, 128, 128, 8
        $region44: #{tpu_custom_call.1} parent=27 // pred_fallthru
          _
      $region28: #{tpu_custom_call.1} parent=5 // pred_fallthru
        _
      %p324 = scmp.le.s32.totalorder 2, %s17
      // Predicated region
      $region45: #{tpu_custom_call.1} parent=5 // pred_check
        %p325 = pneg %p324
      $region46: #{tpu_custom_call.1} parent=5 // pred_check_branch
        %327 = sbr.rel (%p325) target = $region48
      $region47: #{tpu_custom_call.1} parent=5 // pred_region
        %s328 = ssub.s32 %s17, 2
        // Predicated region
        $region49: #{tpu_custom_call.1} parent=47 // pred_check
          %p329 = pneg %p127
        $region50: #{tpu_custom_call.1} parent=47 // pred_check_branch
          %331 = sbr.rel (%p329) target = $region52
        $region51: #{tpu_custom_call.1} parent=47 // pred_region
          %s332 = sand.u32 %s112, 1
          %s333 = scalar_lea.sflag [#allocation4], %s332
          %s334 = sand.u32 %s112, 1
          %s335 = smul.addr %s334, 24
          %s336 = scalar_lea.vmem [#allocation7], %s335
          %337 = dma.done %s333, 384
        $region52: #{tpu_custom_call.1} parent=47 // pred_fallthru
          _
      $region48: #{tpu_custom_call.1} parent=5 // pred_fallthru
        _
    $region6: #{tpu_custom_call.1} parent=1 // loop_footer
      %s21 = sadd.s32 1, %s17
    $region7: #{tpu_custom_call.1} parent=1 // loop_footer_branch
      %16 = sbr.rel target = $region3
    $region8: #{tpu_custom_call.1} parent=1 // loop_exit
      _
    %338 = vsyncpa [#allocation3], 1
    %s339 = scalar_lea.sflag [#allocation3], 1
    %340 = vsyncpa %s339, 1
    %341 = vsyncpa [#allocation6], 1
    %s342 = scalar_lea.sflag [#allocation6], 1
    %343 = vsyncpa %s342, 1
    %344 = vsyncpa [#allocation4], 1
    %s345 = scalar_lea.sflag [#allocation4], 1
    %346 = vsyncpa %s345, 1

</llo_original>
